<compile_context>
chip_gen: v6e
topology: v6e:2x2x1
jax: 0.10.0
libtpu: 0.0.40
codegen_flags: <defaults>
</compile_context>

<pallas_src>
import math
from functools import partial

import jax
import jax.numpy as jnp
from jax import lax
from jax.experimental import pallas as pl
from jax.experimental.pallas import tpu as pltpu


# ---------------- fused Pallas kernel (hot path) ----------------

def _fused_conv_gn_relu_fc_kernel(x_ref, cw_ref, cb_ref, gamma_ref, beta_ref,
                                  fw_ref, fb_ref, o_ref, slab_ref,
                                  *, Hc, W, C, G, use_bf16):
    """One grid step == one batch sample.

    x_ref:      (Hc*W, Cin)   rows ordered (h, w), channels-last
    cw_ref:     (Cin, C)      conv weight (transposed)
    cb_ref:     (1, C)        conv bias (unused when C//G == 1; cancels under GN)
    gamma/beta: (1, C)        GroupNorm affine
    fw_ref:     (Hc*C, Npad)  fc weight, fw[h*C + c, n] = torch_fc_w[n, c*Hc + h],
                              zero-padded on the last dim to a multiple of 128
    fb_ref:     (1, Npad)     fc bias (zero-padded)
    o_ref:      (W, Npad)     lane-dense output block
    slab_ref:   (W, Hc*C)     VMEM scratch used to repack activations for the fc matmul
    """
    HW = Hc * W
    cg = C // G
    inv_cnt = 1.0 / float(HW * cg)

    # --- conv 1x1 as one matmul over this batch's (Hc*W) positions ---
    x = x_ref[...]
    cw = cw_ref[...]
    if use_bf16:
        y = jnp.dot(x.astype(jnp.bfloat16), cw.astype(jnp.bfloat16),
                    preferred_element_type=jnp.float32)             # (HW, C)
    else:
        y = jnp.dot(x, cw, preferred_element_type=jnp.float32)      # (HW, C)
    if cg != 1:
        # conv bias only matters when groups span >1 channel; for cg==1 it cancels
        # exactly under per-channel mean subtraction, so we skip the full-tile add.
        y = y + cb_ref[...]

    # --- GroupNorm(G): centered two-pass, biased variance (PyTorch semantics) ---
    s1 = jnp.sum(y, axis=0, keepdims=True)                          # (1, C)
    if cg == 1:
        mean = s1 * inv_cnt
    else:
        mean = jnp.broadcast_to(
            s1.reshape(G, cg).sum(-1, keepdims=True) * inv_cnt, (G, cg)).reshape(1, C)
    d = y - mean
    s2 = jnp.sum(d * d, axis=0, keepdims=True)                      # (1, C)
    if cg == 1:
        var = s2 * inv_cnt
    else:
        var = jnp.broadcast_to(
            s2.reshape(G, cg).sum(-1, keepdims=True) * inv_cnt, (G, cg)).reshape(1, C)
    scale = lax.rsqrt(var + 1e-5) * gamma_ref[...]                  # folded affine (1, C)
    yr = jnp.maximum(d * scale + beta_ref[...], 0.0)                # (HW, C), ReLU

    # --- repack (Hc*W, C) -> (W, Hc*C) slab with static sub-tile stores ---
    # (keeps everything as plain masked vector stores; no in-kernel lane reshape)
    for h in range(Hc):
        slab_ref[:, h * C:(h + 1) * C] = yr[h * W:(h + 1) * W, :]

    # --- fc: one K = Hc*C matmul per batch, lane-dense (W, Npad) output ---
    slab = slab_ref[...]
    fw = fw_ref[...]
    if use_bf16:
        z = jnp.dot(slab.astype(jnp.bfloat16), fw.astype(jnp.bfloat16),
                    preferred_element_type=jnp.float32)
    else:
        z = jnp.dot(slab, fw, preferred_element_type=jnp.float32)
    o_ref[...] = z + fb_ref[...]


def fused_conv_gn_relu_fc(x, cw, cb, gamma, beta, fw, fb, *, B, Hc, W, C, G,
                          use_bf16=False):
    """x: (B*Hc*W, Cin) channels-last, rows ordered (b, h, w). Returns (B*W, Npad)."""
    Cin = x.shape[1]
    Np = fw.shape[-1]            # padded to a multiple of 128 (lane-dense stores)
    HW = Hc * W
    kernel = partial(_fused_conv_gn_relu_fc_kernel,
                     Hc=Hc, W=W, C=C, G=G, use_bf16=use_bf16)
    return pl.pallas_call(
        kernel,
        out_shape=jax.ShapeDtypeStruct((B * W, Np), jnp.float32),
        grid=(B,),
        in_specs=[
            pl.BlockSpec((HW, Cin), lambda b: (b, 0)),      # per-batch activations
            pl.BlockSpec((Cin, C), lambda b: (0, 0)),       # weights: constant blocks
            pl.BlockSpec((1, C), lambda b: (0, 0)),
            pl.BlockSpec((1, C), lambda b: (0, 0)),
            pl.BlockSpec((1, C), lambda b: (0, 0)),
            pl.BlockSpec((Hc * C, Np), lambda b: (0, 0)),
            pl.BlockSpec((1, Np), lambda b: (0, 0)),
        ],
        out_specs=pl.BlockSpec((W, Np), lambda b: (b, 0)),
        scratch_shapes=[pltpu.VMEM((W, Hc * C), jnp.float32)],
        compiler_params=pltpu.CompilerParams(
            dimension_semantics=("parallel",),
            vmem_limit_bytes=32 * 1024 * 1024),
    )(x, cw, cb, gamma, beta, fw, fb)


# ---------------- plain-JAX glue (jit-able) ----------------

def _make_grid(resolution, extents):
    x1, z1, x2, z2 = extents
    z = jnp.arange(z1, z2, resolution, dtype=jnp.float32)
    x = jnp.arange(x1, x2, resolution, dtype=jnp.float32)
    zz, xx = jnp.meshgrid(z, x, indexing="ij")
    return jnp.stack([xx, zz], axis=-1)                             # (D, Wg, 2)


def _grid_sample_bilinear(feats, grid):
    # feats (B,C,H,W), grid (B,Hg,Wg,2) in [-1,1]; zeros padding, align_corners=False
    B, C, H, W = feats.shape
    gx, gy = grid[..., 0], grid[..., 1]
    ix = ((gx + 1.0) * W - 1.0) * 0.5
    iy = ((gy + 1.0) * H - 1.0) * 0.5
    ix0 = jnp.floor(ix); iy0 = jnp.floor(iy)
    ix1, iy1 = ix0 + 1.0, iy0 + 1.0
    wx1, wy1 = ix - ix0, iy - iy0
    wx0, wy0 = 1.0 - wx1, 1.0 - wy1

    def corner(iyf, ixf):
        iyc = jnp.clip(iyf, 0, H - 1).astype(jnp.int32)
        ixc = jnp.clip(ixf, 0, W - 1).astype(jnp.int32)
        valid = ((iyf >= 0) & (iyf <= H - 1) & (ixf >= 0) & (ixf <= W - 1)).astype(feats.dtype)

        def one(f, iy_, ix_, v):
            return f[:, iy_, ix_] * v[None]                         # (C, Hg, Wg)

        return jax.vmap(one)(feats, iyc, ixc, valid)

    v00 = corner(iy0, ix0); v01 = corner(iy0, ix1)
    v10 = corner(iy1, ix0); v11 = corner(iy1, ix1)
    return (v00 * (wy0 * wx0)[:, None] + v01 * (wy0 * wx1)[:, None]
            + v10 * (wy1 * wx0)[:, None] + v11 * (wy1 * wx1)[:, None])


def resample(bev_feats, calib, grid, near, far):
    # TODO(synk): Resampler class was not defined in the given source; this implements the
    # standard PON Resampler (image-u / depth-z bilinear grid_sample) in plain JAX.
    B, C, Hf, Wf = bev_feats.shape
    cal2 = calib[:, jnp.array([0, 2]), :][:, :, jnp.array([0, 2])]   # (B,2,2)
    cam = jnp.einsum("bij,dwj->bdwi", cal2, grid)                    # (B,D,Wg,2)
    u = cam[..., 0] / cam[..., 1]
    u = u / Wf * 2.0 - 1.0
    z = (cam[..., 1] - near) / (far - near) * 2.0 - 1.0
    gc = jnp.clip(jnp.stack([u, z], axis=-1), -1.1, 1.1)
    return _grid_sample_bilinear(bev_feats, gc)


def _crop_rows(features, calib, ymid, zmin, in_height):
    # Device-side (jit-friendly) equivalent of the per-sample F.pad(fmap, [0,0,-vmin, vmax-H])
    # zero-padded vertical crop; matches math.floor of the torch code via jnp.floor.
    B, Cin, Himg, W = features.shape
    f = calib[:, 1, 1]
    off = calib[:, 1, 2]
    vmid = ymid * f / zmin + off
    vmin = jnp.floor(vmid - in_height / 2).astype(jnp.int32)         # (B,)
    rows = vmin[:, None] + jnp.arange(in_height, dtype=jnp.int32)[None, :]   # (B, Hc)
    valid = ((rows >= 0) & (rows < Himg)).astype(features.dtype)
    rows_c = jnp.clip(rows, 0, Himg - 1)
    idx = jnp.broadcast_to(rows_c[:, None, :, None], (B, Cin, in_height, W))
    gathered = jnp.take_along_axis(features, idx, axis=2)            # (B, Cin, Hc, W)
    return gathered * valid[:, None, :, None]


def dense_transformer_forward(features, calib, params, cfg):
    B, Cin, Himg, W = features.shape
    C, Hc, D, G = cfg["channels"], cfg["in_height"], cfg["out_depth"], cfg["num_groups"]
    N = C * D

    cropped = _crop_rows(features, calib, cfg["ymid"], cfg["zmin"], Hc)   # (B,Cin,Hc,W)

    # channels-last, rows ordered (b, h, w) for the fused per-batch kernel.
    # TODO(synk): at production scale, fuse this crop-gather/transpose into the pallas_call
    # via scalar-prefetched per-batch row offsets instead of a separate HBM pass.
    x = cropped.transpose(0, 2, 3, 1).reshape(B * Hc * W, Cin)

    z = fused_conv_gn_relu_fc(x, params["conv_w_t"], params["conv_b"],
                              params["gn_gamma"], params["gn_beta"],
                              params["fc_w2"], params["fc_b"],
                              B=B, Hc=Hc, W=W, C=C, G=G)              # (B*W, Npad)
    z = z[:, :N]                                                      # drop lane padding
    bev = z.reshape(B, W, C, D).transpose(0, 2, 3, 1)                 # (B, C, D, W)

    return resample(bev, calib, cfg["grid"], cfg["zmin"], cfg["zmax"])


if __name__ == "__main__":
    # module config (small, consistent with __init__)
    in_channels, channels = 8, 16
    resolution = 0.5
    grid_extents = (-2.0, 1.0, 2.0, 4.0)       # (x1, zmin, x2, zmax)
    ymin, ymax = -1.0, 1.0
    focal_length = 4.0
    B, Himg, W = 2, 16, 16

    zmin, zmax = grid_extents[1], grid_extents[3]
    in_height = math.ceil(focal_length * (ymax - ymin) / zmin)       # 8
    ymid = (ymin + ymax) / 2.0                                       # 0.0
    out_depth = math.ceil((zmax - zmin) / resolution)                # 6
    num_groups = 16

    key = jax.random.PRNGKey(0)
    kf, kcw, kcb, kfw, kfb = jax.random.split(key, 5)
    features = jax.random.normal(kf, (B, in_channels, Himg, W), dtype=jnp.float32)
    calib = jnp.array([
        [[8.0, 0.0, 8.0], [0.0, 4.0, 8.0], [0.0, 0.0, 1.0]],
        [[8.0, 0.0, 7.0], [0.0, 4.0, 7.5], [0.0, 0.0, 1.0]],
    ], dtype=jnp.float32)

    C, Hc, D = channels, in_height, out_depth
    N = C * D                                  # 96
    Npad = ((N + 127) // 128) * 128            # 128: lane-dense output stores

    # conv params (weight transposed for channels-last matmul)
    conv_w = jax.random.normal(kcw, (C, in_channels)) * 0.1          # torch (out, in)
    conv_w_t = conv_w.T.astype(jnp.float32)                          # (Cin, C)
    conv_b = (jax.random.normal(kcb, (1, C)) * 0.1).astype(jnp.float32)

    # fc params: canonical torch layout (out=C*D, in=C*Hc) with in-index i = c*Hc + h;
    # pre-reshape host-side to (Hc*C, N) so the kernel does a single K = Hc*C matmul,
    # and zero-pad the output dim to a multiple of 128 for lane-dense stores.
    fc_w = jax.random.normal(kfw, (N, C * Hc)) * 0.05                # torch (out, in)
    fc_w2 = fc_w.T.reshape(C, Hc, N).transpose(1, 0, 2).reshape(Hc * C, N)
    fc_w2 = jnp.pad(fc_w2, ((0, 0), (0, Npad - N))).astype(jnp.float32)   # (Hc*C, Npad)
    fc_b = jax.random.normal(kfb, (1, N)) * 0.05
    fc_b = jnp.pad(fc_b, ((0, 0), (0, Npad - N))).astype(jnp.float32)     # (1, Npad)

    params = dict(
        conv_w_t=conv_w_t,
        conv_b=conv_b,
        gn_gamma=jnp.ones((1, C), jnp.float32),
        gn_beta=jnp.zeros((1, C), jnp.float32),
        fc_w2=fc_w2,
        fc_b=fc_b,
    )
    cfg = dict(channels=C, in_height=Hc, out_depth=D, num_groups=num_groups,
               ymid=ymid, zmin=zmin, zmax=zmax,
               grid=_make_grid(resolution, grid_extents))

    # whole forward is jit-able now (no host-side numpy on calib)
    fwd = jax.jit(lambda f, c, p: dense_transformer_forward(f, c, p, cfg))
    out = fwd(features, calib, params)
    jax.block_until_ready(out)

    grid_w = int(round((grid_extents[2] - grid_extents[0]) / resolution))
    assert out.shape == (B, channels, out_depth, grid_w), out.shape
    assert bool(jnp.all(jnp.isfinite(out)))
    print("KERNEL_OK")
</pallas_src>

<mosaic_0001>
module attributes {stable_mosaic.version = 11 : i64} {
  func.func @_fused_conv_gn_relu_fc_kernel(%arg0: i32, %arg1: memref<128x8xf32, #tpu.memory_space<vmem>>, %arg2: memref<8x16xf32, #tpu.memory_space<vmem>>, %arg3: memref<1x16xf32, #tpu.memory_space<vmem>>, %arg4: memref<1x16xf32, #tpu.memory_space<vmem>>, %arg5: memref<1x16xf32, #tpu.memory_space<vmem>>, %arg6: memref<128x128xf32, #tpu.memory_space<vmem>>, %arg7: memref<1x128xf32, #tpu.memory_space<vmem>>, %arg8: memref<16x128xf32, #tpu.memory_space<vmem>>, %arg9: memref<16x128xf32, #tpu.memory_space<vmem>>) attributes {dimension_semantics = [#tpu.dimension_semantics<parallel>], iteration_bounds = array<i64: 2>, scalar_prefetch = 0 : i64, scratch_operands = 1 : i64, tpu.core_type = #tpu.core_type<tc>, window_params = [{transform_indices = @transform_0, window_bounds = array<i64: 128, 8>}, {pipeline_mode = #tpu.pipeline_mode<synchronous>, transform_indices = @transform_1, window_bounds = array<i64: 8, 16>}, {pipeline_mode = #tpu.pipeline_mode<synchronous>, transform_indices = @transform_2, window_bounds = array<i64: 1, 16>}, {pipeline_mode = #tpu.pipeline_mode<synchronous>, transform_indices = @transform_3, window_bounds = array<i64: 1, 16>}, {pipeline_mode = #tpu.pipeline_mode<synchronous>, transform_indices = @transform_4, window_bounds = array<i64: 1, 16>}, {pipeline_mode = #tpu.pipeline_mode<synchronous>, transform_indices = @transform_5, window_bounds = array<i64: 128, 128>}, {pipeline_mode = #tpu.pipeline_mode<synchronous>, transform_indices = @transform_6, window_bounds = array<i64: 1, 128>}, {transform_indices = @transform_7, window_bounds = array<i64: 16, 128>}]} {
    %c0 = arith.constant 0 : index
    %c0_0 = arith.constant 0 : index
    %0 = vector.load %arg1[%c0, %c0_0] : memref<128x8xf32, #tpu.memory_space<vmem>>, vector<128x8xf32>
    %c0_1 = arith.constant 0 : index
    %c0_2 = arith.constant 0 : index
    %1 = vector.load %arg2[%c0_1, %c0_2] : memref<8x16xf32, #tpu.memory_space<vmem>>, vector<8x16xf32>
    %cst = arith.constant dense<0.000000e+00> : vector<128x16xf32>
    %2 = tpu.matmul %0, %1, %cst {dimension_numbers = #tpu.dot_dimension_numbers<[1], [0], [0], [1], [0, 0, 1, 1], [], []>} : vector<128x8xf32>, vector<8x16xf32>, vector<128x16xf32> -> vector<128x16xf32>
    %cst_3 = arith.constant dense<0.000000e+00> : vector<16xf32>
    %3 = vector.multi_reduction <add>, %2, %cst_3 [0] : vector<128x16xf32> to vector<16xf32>
    %4 = vector.shape_cast %3 : vector<16xf32> to vector<1x16xf32>
    %cst_4 = arith.constant 7.812500e-03 : f32
    %5 = vector.broadcast %cst_4 : f32 to vector<1x16xf32>
    %6 = arith.mulf %4, %5 : vector<1x16xf32>
    %7 = vector.broadcast %6 : vector<1x16xf32> to vector<128x16xf32>
    %8 = arith.subf %2, %7 : vector<128x16xf32>
    %9 = arith.mulf %8, %8 : vector<128x16xf32>
    %cst_5 = arith.constant dense<0.000000e+00> : vector<16xf32>
    %10 = vector.multi_reduction <add>, %9, %cst_5 [0] : vector<128x16xf32> to vector<16xf32>
    %11 = vector.shape_cast %10 : vector<16xf32> to vector<1x16xf32>
    %cst_6 = arith.constant 7.812500e-03 : f32
    %12 = vector.broadcast %cst_6 : f32 to vector<1x16xf32>
    %13 = arith.mulf %11, %12 : vector<1x16xf32>
    %cst_7 = arith.constant 9.99999974E-6 : f32
    %14 = vector.broadcast %cst_7 : f32 to vector<1x16xf32>
    %15 = arith.addf %13, %14 : vector<1x16xf32>
    %16 = math.rsqrt %15 : vector<1x16xf32>
    %c0_8 = arith.constant 0 : index
    %c0_9 = arith.constant 0 : index
    %17 = vector.load %arg4[%c0_8, %c0_9] : memref<1x16xf32, #tpu.memory_space<vmem>>, vector<1x16xf32>
    %18 = arith.mulf %16, %17 : vector<1x16xf32>
    %19 = vector.broadcast %18 : vector<1x16xf32> to vector<128x16xf32>
    %20 = arith.mulf %8, %19 : vector<128x16xf32>
    %c0_10 = arith.constant 0 : index
    %c0_11 = arith.constant 0 : index
    %21 = vector.load %arg5[%c0_10, %c0_11] : memref<1x16xf32, #tpu.memory_space<vmem>>, vector<1x16xf32>
    %22 = vector.broadcast %21 : vector<1x16xf32> to vector<128x16xf32>
    %23 = arith.addf %20, %22 : vector<128x16xf32>
    %cst_12 = arith.constant 0.000000e+00 : f32
    %24 = vector.broadcast %cst_12 : f32 to vector<128x16xf32>
    %25 = arith.maximumf %23, %24 : vector<128x16xf32>
    %26 = vector.extract_strided_slice %25 {offsets = [0, 0], sizes = [16, 16], strides = [1, 1]} : vector<128x16xf32> to vector<16x16xf32>
    %c0_13 = arith.constant 0 : index
    %c0_14 = arith.constant 0 : index
    %27 = vector.load %arg9[%c0_13, %c0_14] : memref<16x128xf32, #tpu.memory_space<vmem>>, vector<16x16xf32>
    tpu.vector_store %arg9[%c0_13, %c0_14], %26 {strides = array<i32>} : memref<16x128xf32, #tpu.memory_space<vmem>>, vector<16x16xf32>,
    %28 = vector.extract_strided_slice %25 {offsets = [16, 0], sizes = [16, 16], strides = [1, 1]} : vector<128x16xf32> to vector<16x16xf32>
    %c0_15 = arith.constant 0 : index
    %c16 = arith.constant 16 : index
    %29 = vector.load %arg9[%c0_15, %c16] : memref<16x128xf32, #tpu.memory_space<vmem>>, vector<16x16xf32>
    tpu.vector_store %arg9[%c0_15, %c16], %28 {strides = array<i32>} : memref<16x128xf32, #tpu.memory_space<vmem>>, vector<16x16xf32>,
    %30 = vector.extract_strided_slice %25 {offsets = [32, 0], sizes = [16, 16], strides = [1, 1]} : vector<128x16xf32> to vector<16x16xf32>
    %c0_16 = arith.constant 0 : index
    %c32 = arith.constant 32 : index
    %31 = vector.load %arg9[%c0_16, %c32] : memref<16x128xf32, #tpu.memory_space<vmem>>, vector<16x16xf32>
    tpu.vector_store %arg9[%c0_16, %c32], %30 {strides = array<i32>} : memref<16x128xf32, #tpu.memory_space<vmem>>, vector<16x16xf32>,
    %32 = vector.extract_strided_slice %25 {offsets = [48, 0], sizes = [16, 16], strides = [1, 1]} : vector<128x16xf32> to vector<16x16xf32>
    %c0_17 = arith.constant 0 : index
    %c48 = arith.constant 48 : index
    %33 = vector.load %arg9[%c0_17, %c48] : memref<16x128xf32, #tpu.memory_space<vmem>>, vector<16x16xf32>
    tpu.vector_store %arg9[%c0_17, %c48], %32 {strides = array<i32>} : memref<16x128xf32, #tpu.memory_space<vmem>>, vector<16x16xf32>,
    %34 = vector.extract_strided_slice %25 {offsets = [64, 0], sizes = [16, 16], strides = [1, 1]} : vector<128x16xf32> to vector<16x16xf32>
    %c0_18 = arith.constant 0 : index
    %c64 = arith.constant 64 : index
    %35 = vector.load %arg9[%c0_18, %c64] : memref<16x128xf32, #tpu.memory_space<vmem>>, vector<16x16xf32>
    tpu.vector_store %arg9[%c0_18, %c64], %34 {strides = array<i32>} : memref<16x128xf32, #tpu.memory_space<vmem>>, vector<16x16xf32>,
    %36 = vector.extract_strided_slice %25 {offsets = [80, 0], sizes = [16, 16], strides = [1, 1]} : vector<128x16xf32> to vector<16x16xf32>
    %c0_19 = arith.constant 0 : index
    %c80 = arith.constant 80 : index
    %37 = vector.load %arg9[%c0_19, %c80] : memref<16x128xf32, #tpu.memory_space<vmem>>, vector<16x16xf32>
    tpu.vector_store %arg9[%c0_19, %c80], %36 {strides = array<i32>} : memref<16x128xf32, #tpu.memory_space<vmem>>, vector<16x16xf32>,
    %38 = vector.extract_strided_slice %25 {offsets = [96, 0], sizes = [16, 16], strides = [1, 1]} : vector<128x16xf32> to vector<16x16xf32>
    %c0_20 = arith.constant 0 : index
    %c96 = arith.constant 96 : index
    %39 = vector.load %arg9[%c0_20, %c96] : memref<16x128xf32, #tpu.memory_space<vmem>>, vector<16x16xf32>
    tpu.vector_store %arg9[%c0_20, %c96], %38 {strides = array<i32>} : memref<16x128xf32, #tpu.memory_space<vmem>>, vector<16x16xf32>,
    %40 = vector.extract_strided_slice %25 {offsets = [112, 0], sizes = [16, 16], strides = [1, 1]} : vector<128x16xf32> to vector<16x16xf32>
    %c0_21 = arith.constant 0 : index
    %c112 = arith.constant 112 : index
    %41 = vector.load %arg9[%c0_21, %c112] : memref<16x128xf32, #tpu.memory_space<vmem>>, vector<16x16xf32>
    tpu.vector_store %arg9[%c0_21, %c112], %40 {strides = array<i32>} : memref<16x128xf32, #tpu.memory_space<vmem>>, vector<16x16xf32>,
    %c0_22 = arith.constant 0 : index
    %c0_23 = arith.constant 0 : index
    %42 = vector.load %arg9[%c0_22, %c0_23] : memref<16x128xf32, #tpu.memory_space<vmem>>, vector<16x128xf32>
    %c0_24 = arith.constant 0 : index
    %c0_25 = arith.constant 0 : index
    %43 = vector.load %arg6[%c0_24, %c0_25] : memref<128x128xf32, #tpu.memory_space<vmem>>, vector<128x128xf32>
    %cst_26 = arith.constant dense<0.000000e+00> : vector<16x128xf32>
    %44 = tpu.matmul %42, %43, %cst_26 {dimension_numbers = #tpu.dot_dimension_numbers<[1], [0], [0], [1], [0, 0, 1, 1], [], []>} : vector<16x128xf32>, vector<128x128xf32>, vector<16x128xf32> -> vector<16x128xf32>
    %c0_27 = arith.constant 0 : index
    %c0_28 = arith.constant 0 : index
    %45 = vector.load %arg7[%c0_27, %c0_28] : memref<1x128xf32, #tpu.memory_space<vmem>>, vector<1x128xf32>
    %46 = vector.broadcast %45 : vector<1x128xf32> to vector<16x128xf32>
    %47 = arith.addf %44, %46 : vector<16x128xf32>
    %c0_29 = arith.constant 0 : index
    %c0_30 = arith.constant 0 : index
    %48 = vector.load %arg8[%c0_29, %c0_30] : memref<16x128xf32, #tpu.memory_space<vmem>>, vector<16x128xf32>
    tpu.vector_store %arg8[%c0_29, %c0_30], %47 {strides = array<i32>} : memref<16x128xf32, #tpu.memory_space<vmem>>, vector<16x128xf32>,
    return
  }
  func.func @transform_0(%arg0: i32) -> (i32, i32) {
    %c0_i32 = arith.constant 0 : i32
    %c0_i32_0 = arith.constant 0 : i32
    return %arg0, %c0_i32 : i32, i32
  }
  func.func @transform_1(%arg0: i32) -> (i32, i32) {
    %c0_i32 = arith.constant 0 : i32
    %c0_i32_0 = arith.constant 0 : i32
    %c0_i32_1 = arith.constant 0 : i32
    return %c0_i32, %c0_i32_0 : i32, i32
  }
  func.func @transform_2(%arg0: i32) -> (i32, i32) {
    %c0_i32 = arith.constant 0 : i32
    %c0_i32_0 = arith.constant 0 : i32
    %c0_i32_1 = arith.constant 0 : i32
    return %c0_i32, %c0_i32_0 : i32, i32
  }
  func.func @transform_3(%arg0: i32) -> (i32, i32) {
    %c0_i32 = arith.constant 0 : i32
    %c0_i32_0 = arith.constant 0 : i32
    %c0_i32_1 = arith.constant 0 : i32
    return %c0_i32, %c0_i32_0 : i32, i32
  }
  func.func @transform_4(%arg0: i32) -> (i32, i32) {
    %c0_i32 = arith.constant 0 : i32
    %c0_i32_0 = arith.constant 0 : i32
    %c0_i32_1 = arith.constant 0 : i32
    return %c0_i32, %c0_i32_0 : i32, i32
  }
  func.func @transform_5(%arg0: i32) -> (i32, i32) {
    %c0_i32 = arith.constant 0 : i32
    %c0_i32_0 = arith.constant 0 : i32
    %c0_i32_1 = arith.constant 0 : i32
    return %c0_i32, %c0_i32_0 : i32, i32
  }
  func.func @transform_6(%arg0: i32) -> (i32, i32) {
    %c0_i32 = arith.constant 0 : i32
    %c0_i32_0 = arith.constant 0 : i32
    %c0_i32_1 = arith.constant 0 : i32
    return %c0_i32, %c0_i32_0 : i32, i32
  }
  func.func @transform_7(%arg0: i32) -> (i32, i32) {
    %c0_i32 = arith.constant 0 : i32
    %c0_i32_0 = arith.constant 0 : i32
    return %arg0, %c0_i32 : i32, i32
  }
}

</mosaic_0001>

<llo_original>
// kernel: _lambda_.1
$region0: #{_lambda_.1}
  #allocation0 [shape = 'u32[]', space=smem, size = 0x4, offset = 0x4, fixed_abs, tag = 'smem constant byte address 0x4 - core index']
  #allocation1 [shape = 'u32[144,128]{1,0:T(1,128)}', space=vmem, size = 0x12000, scoped, tag = 'internal scratch']
  #allocation2 [shape = 'f32[16,128]{1,0:T(8,128)}', space=vmem, size = 0x2000, scoped, tag = 'scratch operand']
  %s0 = inlined_call_operand.vmem [shape: f32[256,8], index: 0, kind: input, shape index: {}]
  %s1 = inlined_call_operand.vmem [shape: f32[8,16], index: 1, kind: input, shape index: {}]
  %s2 = inlined_call_operand.vmem [shape: f32[1,16], index: 2, kind: input, shape index: {}]
  %s3 = inlined_call_operand.vmem [shape: f32[1,16], index: 3, kind: input, shape index: {}]
  %s4 = inlined_call_operand.vmem [shape: f32[1,16], index: 4, kind: input, shape index: {}]
  %s5 = inlined_call_operand.vmem [shape: f32[128,128], index: 5, kind: input, shape index: {}]
  %s6 = inlined_call_operand.vmem [shape: f32[1,128], index: 6, kind: input, shape index: {}]
  %s7 = inlined_call_operand.vmem [shape: f32[32,128], index: 7, kind: output, shape index: {}]
  %s8 = sld [smem:[#allocation0]]
  $region61: #{_lambda_.1} parent=0
    _
  %s10 = ssub.s32 1, %s8
  %s11 = scalar_select 0, %s10, %s8
  loop: start=0, step=1, limit=4
  $region2: #{_lambda_.1} parent=0 // loop_pre_header
    _
  $region3: #{_lambda_.1} parent=0 // loop_header
    %s13 = sphi 0, %s17
    %p14 = scmp.ge.s32.totalorder %s13, 4
    %s23 = sphi 0, %s25
    %s26 = sphi 0, %s23
    %s27 = sphi 0, %s26
    %s43 = sphi 0, %s27
    %s47 = sphi 0, %s47
    %s49 = sphi 0, %s47
    %s50 = sphi 0, %s49
    %s64 = sphi 0, %s50
    %s68 = sphi 0, %s68
    %s70 = sphi 0, %s68
    %s71 = sphi 0, %s70
    %s85 = sphi 0, %s71
    %s89 = sphi 0, %s89
    %s91 = sphi 0, %s89
    %s92 = sphi 0, %s91
    %s106 = sphi 0, %s92
    %s110 = sphi 0, %s110
    %s112 = sphi 0, %s110
    %s113 = sphi 0, %s112
    %s127 = sphi 0, %s113
    %s131 = sphi 0, %s131
    %s133 = sphi 0, %s131
    %s134 = sphi 0, %s133
    %s148 = sphi 0, %s134
    %s152 = sphi 0, %s152
    %s154 = sphi 0, %s152
    %s155 = sphi 0, %s154
    %s169 = sphi 0, %s155
    %s175 = sphi 0, %s177
    %s178 = sphi 0, %s175
    %s179 = sphi 0, %s178
    %s195 = sphi 0, %s179
  $region4: #{_lambda_.1} parent=0 // loop_header_branch
    %16 = sbr.rel (%p14) target = $region8
  $region5: #{_lambda_.1} parent=0 // loop_body
    %s18 = ssub.s32 %s13, 1
    %s19 = ssub.s32 %s13, 2
    %s20 = sadd.s32 %s13, 1
    %s21 = ssub.s32 %s13, %s20
    %p22 = scmp.eq.s32.totalorder %s21, 0
    %s24 = sadd.s32 %s23, 1
    %s25 = scalar_select %p22, %s23, %s24
    %p28 = pneg %p22
    %p29 = scmp.eq.s32.totalorder %s13, 1
    %p30 = por %p28, %p29
    %p31 = scmp.ne.s32.totalorder %s23, %s26
    %p32 = scmp.eq.s32.totalorder %s13, 0
    %p33 = por %p31, %p32
    %p34 = scmp.ne.s32.totalorder %s23, %s26
    %p35 = scmp.eq.s32.totalorder %s18, 1
    %p36 = por %p34, %p35
    %p37 = scmp.ne.s32.totalorder %s26, %s27
    %p38 = scmp.eq.s32.totalorder %s18, 0
    %p39 = por %p37, %p38
    %p40 = scmp.ne.s32.totalorder %s26, %s27
    %p41 = scmp.eq.s32.totalorder %s19, 1
    %p42 = por %p40, %p41
    %p44 = scmp.ne.s32.totalorder %s27, %s43
    %p45 = scmp.eq.s32.totalorder %s19, 0
    %p46 = por %p44, %p45
    %s48 = sadd.s32 %s47, 1
    %p51 = scmp.eq.s32.totalorder %s13, 1
    %p52 = scmp.ne.s32.totalorder %s47, %s49
    %p53 = scmp.eq.s32.totalorder %s13, 0
    %p54 = por %p52, %p53
    %p55 = scmp.ne.s32.totalorder %s47, %s49
    %p56 = scmp.eq.s32.totalorder %s18, 1
    %p57 = por %p55, %p56
    %p58 = scmp.ne.s32.totalorder %s49, %s50
    %p59 = scmp.eq.s32.totalorder %s18, 0
    %p60 = por %p58, %p59
    %p61 = scmp.ne.s32.totalorder %s49, %s50
    %p62 = scmp.eq.s32.totalorder %s19, 1
    %p63 = por %p61, %p62
    %p65 = scmp.ne.s32.totalorder %s50, %s64
    %p66 = scmp.eq.s32.totalorder %s19, 0
    %p67 = por %p65, %p66
    %s69 = sadd.s32 %s68, 1
    %p72 = scmp.eq.s32.totalorder %s13, 1
    %p73 = scmp.ne.s32.totalorder %s68, %s70
    %p74 = scmp.eq.s32.totalorder %s13, 0
    %p75 = por %p73, %p74
    %p76 = scmp.ne.s32.totalorder %s68, %s70
    %p77 = scmp.eq.s32.totalorder %s18, 1
    %p78 = por %p76, %p77
    %p79 = scmp.ne.s32.totalorder %s70, %s71
    %p80 = scmp.eq.s32.totalorder %s18, 0
    %p81 = por %p79, %p80
    %p82 = scmp.ne.s32.totalorder %s70, %s71
    %p83 = scmp.eq.s32.totalorder %s19, 1
    %p84 = por %p82, %p83
    %p86 = scmp.ne.s32.totalorder %s71, %s85
    %p87 = scmp.eq.s32.totalorder %s19, 0
    %p88 = por %p86, %p87
    %s90 = sadd.s32 %s89, 1
    %p93 = scmp.eq.s32.totalorder %s13, 1
    %p94 = scmp.ne.s32.totalorder %s89, %s91
    %p95 = scmp.eq.s32.totalorder %s13, 0
    %p96 = por %p94, %p95
    %p97 = scmp.ne.s32.totalorder %s89, %s91
    %p98 = scmp.eq.s32.totalorder %s18, 1
    %p99 = por %p97, %p98
    %p100 = scmp.ne.s32.totalorder %s91, %s92
    %p101 = scmp.eq.s32.totalorder %s18, 0
    %p102 = por %p100, %p101
    %p103 = scmp.ne.s32.totalorder %s91, %s92
    %p104 = scmp.eq.s32.totalorder %s19, 1
    %p105 = por %p103, %p104
    %p107 = scmp.ne.s32.totalorder %s92, %s106
    %p108 = scmp.eq.s32.totalorder %s19, 0
    %p109 = por %p107, %p108
    %s111 = sadd.s32 %s110, 1
    %p114 = scmp.eq.s32.totalorder %s13, 1
    %p115 = scmp.ne.s32.totalorder %s110, %s112
    %p116 = scmp.eq.s32.totalorder %s13, 0
    %p117 = por %p115, %p116
    %p118 = scmp.ne.s32.totalorder %s110, %s112
    %p119 = scmp.eq.s32.totalorder %s18, 1
    %p120 = por %p118, %p119
    %p121 = scmp.ne.s32.totalorder %s112, %s113
    %p122 = scmp.eq.s32.totalorder %s18, 0
    %p123 = por %p121, %p122
    %p124 = scmp.ne.s32.totalorder %s112, %s113
    %p125 = scmp.eq.s32.totalorder %s19, 1
    %p126 = por %p124, %p125
    %p128 = scmp.ne.s32.totalorder %s113, %s127
    %p129 = scmp.eq.s32.totalorder %s19, 0
    %p130 = por %p128, %p129
    %s132 = sadd.s32 %s131, 1
    %p135 = scmp.eq.s32.totalorder %s13, 1
    %p136 = scmp.ne.s32.totalorder %s131, %s133
    %p137 = scmp.eq.s32.totalorder %s13, 0
    %p138 = por %p136, %p137
    %p139 = scmp.ne.s32.totalorder %s131, %s133
    %p140 = scmp.eq.s32.totalorder %s18, 1
    %p141 = por %p139, %p140
    %p142 = scmp.ne.s32.totalorder %s133, %s134
    %p143 = scmp.eq.s32.totalorder %s18, 0
    %p144 = por %p142, %p143
    %p145 = scmp.ne.s32.totalorder %s133, %s134
    %p146 = scmp.eq.s32.totalorder %s19, 1
    %p147 = por %p145, %p146
    %p149 = scmp.ne.s32.totalorder %s134, %s148
    %p150 = scmp.eq.s32.totalorder %s19, 0
    %p151 = por %p149, %p150
    %s153 = sadd.s32 %s152, 1
    %p156 = scmp.eq.s32.totalorder %s13, 1
    %p157 = scmp.ne.s32.totalorder %s152, %s154
    %p158 = scmp.eq.s32.totalorder %s13, 0
    %p159 = por %p157, %p158
    %p160 = scmp.ne.s32.totalorder %s152, %s154
    %p161 = scmp.eq.s32.totalorder %s18, 1
    %p162 = por %p160, %p161
    %p163 = scmp.ne.s32.totalorder %s154, %s155
    %p164 = scmp.eq.s32.totalorder %s18, 0
    %p165 = por %p163, %p164
    %p166 = scmp.ne.s32.totalorder %s154, %s155
    %p167 = scmp.eq.s32.totalorder %s19, 1
    %p168 = por %p166, %p167
    %p170 = scmp.ne.s32.totalorder %s155, %s169
    %p171 = scmp.eq.s32.totalorder %s19, 0
    %p172 = por %p170, %p171
    %s173 = ssub.s32 %s13, %s20
    %p174 = scmp.eq.s32.totalorder %s173, 0
    %s176 = sadd.s32 %s175, 1
    %s177 = scalar_select %p174, %s175, %s176
    %p180 = pneg %p174
    %p181 = scmp.eq.s32.totalorder %s13, 1
    %p182 = por %p180, %p181
    %p183 = scmp.ne.s32.totalorder %s175, %s178
    %p184 = scmp.eq.s32.totalorder %s13, 0
    %p185 = por %p183, %p184
    %p186 = scmp.ne.s32.totalorder %s175, %s178
    %p187 = scmp.eq.s32.totalorder %s18, 1
    %p188 = por %p186, %p187
    %p189 = scmp.ne.s32.totalorder %s178, %s179
    %p190 = scmp.eq.s32.totalorder %s18, 0
    %p191 = por %p189, %p190
    %p192 = scmp.ne.s32.totalorder %s178, %s179
    %p193 = scmp.eq.s32.totalorder %s19, 1
    %p194 = por %p192, %p193
    %p196 = scmp.ne.s32.totalorder %s179, %s195
    %p197 = scmp.eq.s32.totalorder %s19, 0
    %p198 = por %p196, %p197
    %p199 = scmp.le.s32.totalorder 1, %s13
    %p200 = scmp.lt.s32.totalorder %s13, 3
    %p201 = pnand %p199, %p200
    %p202 = pneg %p201
    // Predicated region
    $region9: #{_lambda_.1} parent=5 // pred_check
      _
    $region10: #{_lambda_.1} parent=5 // pred_check_branch
      %204 = sbr.rel (%p201) target = $region12
    $region11: #{_lambda_.1} parent=5 // pred_region
      %s205 = ssub.s32 %s13, 1
      // Predicated region
      $region13: #{_lambda_.1} parent=11 // pred_check
        %p206 = pneg %p60
      $region14: #{_lambda_.1} parent=11 // pred_check_branch
        %208 = sbr.rel (%p206) target = $region16
      $region15: #{_lambda_.1} parent=11 // pred_region
        _
      $region16: #{_lambda_.1} parent=11 // pred_fallthru
        _
      // Predicated region
      $region17: #{_lambda_.1} parent=11 // pred_check
        %p209 = pneg %p81
      $region18: #{_lambda_.1} parent=11 // pred_check_branch
        %211 = sbr.rel (%p209) target = $region20
      $region19: #{_lambda_.1} parent=11 // pred_region
        _
      $region20: #{_lambda_.1} parent=11 // pred_fallthru
        _
      // Predicated region
      $region21: #{_lambda_.1} parent=11 // pred_check
        %p212 = pneg %p102
      $region22: #{_lambda_.1} parent=11 // pred_check_branch
        %214 = sbr.rel (%p212) target = $region24
      $region23: #{_lambda_.1} parent=11 // pred_region
        _
      $region24: #{_lambda_.1} parent=11 // pred_fallthru
        _
      // Predicated region
      $region25: #{_lambda_.1} parent=11 // pred_check
        %p215 = pneg %p123
      $region26: #{_lambda_.1} parent=11 // pred_check_branch
        %217 = sbr.rel (%p215) target = $region28
      $region27: #{_lambda_.1} parent=11 // pred_region
        _
      $region28: #{_lambda_.1} parent=11 // pred_fallthru
        _
      // Predicated region
      $region29: #{_lambda_.1} parent=11 // pred_check
        %p218 = pneg %p144
      $region30: #{_lambda_.1} parent=11 // pred_check_branch
        %220 = sbr.rel (%p218) target = $region32
      $region31: #{_lambda_.1} parent=11 // pred_region
        _
      $region32: #{_lambda_.1} parent=11 // pred_fallthru
        _
      // Predicated region
      $region33: #{_lambda_.1} parent=11 // pred_check
        %p221 = pneg %p165
      $region34: #{_lambda_.1} parent=11 // pred_check_branch
        %223 = sbr.rel (%p221) target = $region36
      $region35: #{_lambda_.1} parent=11 // pred_region
        _
      $region36: #{_lambda_.1} parent=11 // pred_fallthru
        _
    $region12: #{_lambda_.1} parent=5 // pred_fallthru
      _
    %p224 = scmp.lt.s32.totalorder %s13, 2
    // Predicated region
    $region37: #{_lambda_.1} parent=5 // pred_check
      %p225 = pneg %p224
    $region38: #{_lambda_.1} parent=5 // pred_check_branch
      %227 = sbr.rel (%p225) target = $region40
    $region39: #{_lambda_.1} parent=5 // pred_region
      // Predicated region
      $region41: #{_lambda_.1} parent=39 // pred_check
        %p228 = pneg %p33
      $region42: #{_lambda_.1} parent=39 // pred_check_branch
        %230 = sbr.rel (%p228) target = $region44
      $region43: #{_lambda_.1} parent=39 // pred_region
        %s231 = smul.u32 16, %s13
        %p232 = scmp.lt.s32.totalorder %s231, 31
        %s233 = scalar_select %p232, %s231, 31
        %s234 = smul.addr %s233, 8
        %s235 = scalar_lea.vmem %s0, %s234
        %s236 = smul.u32 16, %s13
      $region44: #{_lambda_.1} parent=39 // pred_fallthru
        _
    $region40: #{_lambda_.1} parent=5 // pred_fallthru
      _
    %p237 = scmp.le.s32.totalorder 1, %s13
    %p238 = scmp.lt.s32.totalorder %s13, 3
    %p239 = pnand %p237, %p238
    %p240 = pneg %p239
    // Predicated region
    $region45: #{_lambda_.1} parent=5 // pred_check
      _
    $region46: #{_lambda_.1} parent=5 // pred_check_branch
      %242 = sbr.rel (%p239) target = $region48
    $region47: #{_lambda_.1} parent=5 // pred_region
      %s243 = ssub.s32 %s13, 1
      %s244 = smul.u32 16, %s18
      %p245 = scmp.lt.s32.totalorder %s244, 31
      %s246 = scalar_select %p245, %s244, 31
      %s247 = smul.addr %s246, 8
      %s248 = scalar_lea.vmem %s0, %s247
      %p249 = pneg %p39
      %p250 = pneg %p36
      %p251 = pneg %p60
      %p252 = pneg %p57
      %p253 = pneg %p81
      %p254 = pneg %p78
      %p255 = pneg %p102
      %p256 = pneg %p99
      %p257 = pneg %p123
      %p258 = pneg %p120
      %p259 = pneg %p144
      %p260 = pneg %p141
      %p261 = pneg %p165
      %p262 = pneg %p162
      %p263 = pneg %p191
      %p264 = pneg %p188
      %s265 = smul.u32 2, %s18
      %p266 = scmp.lt.s32.totalorder %s265, 3
      %s267 = scalar_select %p266, %s265, 3
      %s268 = smul.addr %s267, 8
      %s269 = scalar_lea.vmem %s7, %s268
      %s270 = smul.u32 16, %s18
      %p271 = scmp.lt.s32.totalorder %s270, 31
      %s272 = scalar_select %p271, %s270, 31
      %s273 = smul.addr %s272, 8
      %s274 = scalar_lea.vmem %s0, %s273
      %s275 = smul.u32 16, %s18
      %s276 = smul.u32 2, %s18
      %p277 = scmp.lt.s32.totalorder %s276, 3
      %s278 = scalar_select %p277, %s276, 3
      %s279 = smul.addr %s278, 8
      %s280 = scalar_lea.vmem %s7, %s279
      %s281 = smul.u32 2, %s18
      %v282 = vld [vmem:[%s274] sm:$0xff]
      %v283 = vld [vmem:[%s274 + $0x8] sm:$0xff]
      %v284 = vld [vmem:[%s274 + $0x10] sm:$0xff]
      %v285 = vld [vmem:[%s274 + $0x18] sm:$0xff]
      %v286 = vld [vmem:[%s274 + $0x20] sm:$0xff]
      %v287 = vld [vmem:[%s274 + $0x28] sm:$0xff]
      %v288 = vld [vmem:[%s274 + $0x30] sm:$0xff]
      %v289 = vld [vmem:[%s274 + $0x38] sm:$0xff]
      %v290 = vld [vmem:[%s274 + $0x40] sm:$0xff]
      %v291 = vld [vmem:[%s274 + $0x48] sm:$0xff]
      %v292 = vld [vmem:[%s274 + $0x50] sm:$0xff]
      %v293 = vld [vmem:[%s274 + $0x58] sm:$0xff]
      %v294 = vld [vmem:[%s274 + $0x60] sm:$0xff]
      %v295 = vld [vmem:[%s274 + $0x68] sm:$0xff]
      %v296 = vld [vmem:[%s274 + $0x70] sm:$0xff]
      %v297 = vld [vmem:[%s274 + $0x78] sm:$0xff]
      %v298 = vld [vmem:[%s1] sm:$0xff]
      %vm299 = vcmask 64512
      %v301 = vsel %vm299, %v282, 0
      %v304 = vsel %vm299, %v283, 0
      %v307 = vsel %vm299, %v284, 0
      %v310 = vsel %vm299, %v285, 0
      %v313 = vsel %vm299, %v286, 0
      %v316 = vsel %vm299, %v287, 0
      %v319 = vsel %vm299, %v288, 0
      %v322 = vsel %vm299, %v289, 0
      %v325 = vsel %vm299, %v290, 0
      %v328 = vsel %vm299, %v291, 0
      %v331 = vsel %vm299, %v292, 0
      %v334 = vsel %vm299, %v293, 0
      %v337 = vsel %vm299, %v294, 0
      %v340 = vsel %vm299, %v295, 0
      %v343 = vsel %vm299, %v296, 0
      %v346 = vsel %vm299, %v297, 0
      %348 = vmatprep.subr.mxu0 0.0
      %349 = vmatpush1.msra.mxu0 0.0
      %350 = vmatprep.subr.mxu0 0.0
      %351 = vmatpush1.msra.mxu0 0.0
      %352 = vmatprep.subr.mxu0 0.0
      %353 = vmatpush1.msra.mxu0 0.0
      %354 = vmatprep.subr.mxu0 0.0
      %355 = vmatpush1.msra.mxu0 0.0
      %356 = vmatprep.subr.mxu0 0.0
      %357 = vmatpush1.msra.mxu0 0.0
      %358 = vmatprep.subr.mxu0 0.0
      %359 = vmatpush1.msra.mxu0 0.0
      %360 = vmatprep.subr.mxu0 0.0
      %361 = vmatpush1.msra.mxu0 0.0
      %362 = vmatprep.subr.mxu0 0.0
      %363 = vmatpush1.msra.mxu0 0.0
      %364 = vmatprep.subr.mxu0 0.0
      %365 = vmatpush1.msra.mxu0 0.0
      %366 = vmatprep.subr.mxu0 0.0
      %367 = vmatpush1.msra.mxu0 0.0
      %368 = vmatprep.subr.mxu0 0.0
      %369 = vmatpush1.msra.mxu0 0.0
      %370 = vmatprep.subr.mxu0 0.0
      %371 = vmatpush1.msra.mxu0 0.0
      %372 = vmatprep.subr.mxu0 0.0
      %373 = vmatpush1.msra.mxu0 0.0
      %374 = vmatprep.subr.mxu0 0.0
      %375 = vmatpush1.msra.mxu0 0.0
      %376 = vmatprep.subr.mxu0 0.0
      %377 = vmatpush1.msra.mxu0 0.0
      %378 = vmatprep.subr.mxu0 0.0
      %379 = vmatpush1.msra.mxu0 %v298
      %380 = vmatprep.subr.mxu0 0.0
      %381 = vmatpush2.msra.mxu0 0.0
      %382 = vmatprep.subr.mxu0 0.0
      %383 = vmatpush2.msra.mxu0 0.0
      %384 = vmatprep.subr.mxu0 0.0
      %385 = vmatpush2.msra.mxu0 0.0
      %386 = vmatprep.subr.mxu0 0.0
      %387 = vmatpush2.msra.mxu0 0.0
      %388 = vmatprep.subr.mxu0 0.0
      %389 = vmatpush2.msra.mxu0 0.0
      %390 = vmatprep.subr.mxu0 0.0
      %391 = vmatpush2.msra.mxu0 0.0
      %392 = vmatprep.subr.mxu0 0.0
      %393 = vmatpush2.msra.mxu0 0.0
      %394 = vmatprep.subr.mxu0 0.0
      %395 = vmatpush2.msra.mxu0 0.0
      %396 = vmatprep.subr.mxu0 0.0
      %397 = vmatpush2.msra.mxu0 0.0
      %398 = vmatprep.subr.mxu0 0.0
      %399 = vmatpush2.msra.mxu0 0.0
      %400 = vmatprep.subr.mxu0 0.0
      %401 = vmatpush2.msra.mxu0 0.0
      %402 = vmatprep.subr.mxu0 0.0
      %403 = vmatpush2.msra.mxu0 0.0
      %404 = vmatprep.subr.mxu0 0.0
      %405 = vmatpush2.msra.mxu0 0.0
      %406 = vmatprep.subr.mxu0 0.0
      %407 = vmatpush2.msra.mxu0 0.0
      %408 = vmatprep.subr.mxu0 0.0
      %409 = vmatpush2.msra.mxu0 0.0
      %410 = vmatprep.subr.mxu0 0.0
      %411 = vmatpush2.msra.mxu0 0.0
      %412 = vmatprep.mubr.f32.mxu0 0.0
      %413 = vmatmul.mubr.f32.gmra.mxu0 %v301
      %v414 = vpop.f32.mrf.mxu0
      %v415 = vadd.f32 0.0, %v414
      %v416 = vpop.f32.mrf.mxu0
      %417 = vmatprep.mubr.f32.mxu0 0.0
      %418 = vmatmul.mubr.f32.gmra.mxu0 %v304
      %v419 = vpop.f32.mrf.mxu0
      %v420 = vadd.f32 0.0, %v419
      %v421 = vpop.f32.mrf.mxu0
      %422 = vmatprep.mubr.f32.mxu0 0.0
      %423 = vmatmul.mubr.f32.gmra.mxu0 %v307
      %v424 = vpop.f32.mrf.mxu0
      %v425 = vadd.f32 0.0, %v424
      %v426 = vpop.f32.mrf.mxu0
      %427 = vmatprep.mubr.f32.mxu0 0.0
      %428 = vmatmul.mubr.f32.gmra.mxu0 %v310
      %v429 = vpop.f32.mrf.mxu0
      %v430 = vadd.f32 0.0, %v429
      %v431 = vpop.f32.mrf.mxu0
      %432 = vmatprep.mubr.f32.mxu0 0.0
      %433 = vmatmul.mubr.f32.gmra.mxu0 %v313
      %v434 = vpop.f32.mrf.mxu0
      %v435 = vadd.f32 0.0, %v434
      %v436 = vpop.f32.mrf.mxu0
      %437 = vmatprep.mubr.f32.mxu0 0.0
      %438 = vmatmul.mubr.f32.gmra.mxu0 %v316
      %v439 = vpop.f32.mrf.mxu0
      %v440 = vadd.f32 0.0, %v439
      %v441 = vpop.f32.mrf.mxu0
      %442 = vmatprep.mubr.f32.mxu0 0.0
      %443 = vmatmul.mubr.f32.gmra.mxu0 %v319
      %v444 = vpop.f32.mrf.mxu0
      %v445 = vadd.f32 0.0, %v444
      %v446 = vpop.f32.mrf.mxu0
      %447 = vmatprep.mubr.f32.mxu0 0.0
      %448 = vmatmul.mubr.f32.gmra.mxu0 %v322
      %v449 = vpop.f32.mrf.mxu0
      %v450 = vadd.f32 0.0, %v449
      %v451 = vpop.f32.mrf.mxu0
      %452 = vmatprep.mubr.f32.mxu0 0.0
      %453 = vmatmul.mubr.f32.gmra.mxu0 %v325
      %v454 = vpop.f32.mrf.mxu0
      %v455 = vadd.f32 0.0, %v454
      %v456 = vpop.f32.mrf.mxu0
      %457 = vmatprep.mubr.f32.mxu0 0.0
      %458 = vmatmul.mubr.f32.gmra.mxu0 %v328
      %v459 = vpop.f32.mrf.mxu0
      %v460 = vadd.f32 0.0, %v459
      %v461 = vpop.f32.mrf.mxu0
      %462 = vmatprep.mubr.f32.mxu0 0.0
      %463 = vmatmul.mubr.f32.gmra.mxu0 %v331
      %v464 = vpop.f32.mrf.mxu0
      %v465 = vadd.f32 0.0, %v464
      %v466 = vpop.f32.mrf.mxu0
      %467 = vmatprep.mubr.f32.mxu0 0.0
      %468 = vmatmul.mubr.f32.gmra.mxu0 %v334
      %v469 = vpop.f32.mrf.mxu0
      %v470 = vadd.f32 0.0, %v469
      %v471 = vpop.f32.mrf.mxu0
      %472 = vmatprep.mubr.f32.mxu0 0.0
      %473 = vmatmul.mubr.f32.gmra.mxu0 %v337
      %v474 = vpop.f32.mrf.mxu0
      %v475 = vadd.f32 0.0, %v474
      %v476 = vpop.f32.mrf.mxu0
      %477 = vmatprep.mubr.f32.mxu0 0.0
      %478 = vmatmul.mubr.f32.gmra.mxu0 %v340
      %v479 = vpop.f32.mrf.mxu0
      %v480 = vadd.f32 0.0, %v479
      %v481 = vpop.f32.mrf.mxu0
      %482 = vmatprep.mubr.f32.mxu0 0.0
      %483 = vmatmul.mubr.f32.gmra.mxu0 %v343
      %v484 = vpop.f32.mrf.mxu0
      %v485 = vadd.f32 0.0, %v484
      %v486 = vpop.f32.mrf.mxu0
      %487 = vmatprep.mubr.f32.mxu0 0.0
      %488 = vmatmul.mubr.f32.gmra.mxu0 %v346
      %v489 = vpop.f32.mrf.mxu0
      %v490 = vadd.f32 0.0, %v489
      %v491 = vpop.f32.mrf.mxu0
      %492 = vdwg.mxu0
      %vm493 = vcmask 130048
      %v494 = vsel %vm493, %v415, 0.0
      %v495 = vsel %vm493, %v420, 0.0
      %v496 = vadd.f32 %v494, %v495
      %v497 = vsel %vm493, %v425, 0.0
      %v498 = vadd.f32 %v496, %v497
      %v499 = vsel %vm493, %v430, 0.0
      %v500 = vadd.f32 %v498, %v499
      %v501 = vsel %vm493, %v435, 0.0
      %v502 = vadd.f32 %v500, %v501
      %v503 = vsel %vm493, %v440, 0.0
      %v504 = vadd.f32 %v502, %v503
      %v505 = vsel %vm493, %v445, 0.0
      %v506 = vadd.f32 %v504, %v505
      %v507 = vsel %vm493, %v450, 0.0
      %v508 = vadd.f32 %v506, %v507
      %v509 = vsel %vm493, %v455, 0.0
      %v510 = vadd.f32 %v508, %v509
      %v511 = vsel %vm493, %v460, 0.0
      %v512 = vadd.f32 %v510, %v511
      %v513 = vsel %vm493, %v465, 0.0
      %v514 = vadd.f32 %v512, %v513
      %v515 = vsel %vm493, %v470, 0.0
      %v516 = vadd.f32 %v514, %v515
      %v517 = vsel %vm493, %v475, 0.0
      %v518 = vadd.f32 %v516, %v517
      %v519 = vsel %vm493, %v480, 0.0
      %v520 = vadd.f32 %v518, %v519
      %v521 = vsel %vm493, %v485, 0.0
      %v522 = vadd.f32 %v520, %v521
      %v523 = vsel %vm493, %v490, 0.0
      %v524 = vadd.f32 %v522, %v523
      %v525 = vrot.slane %v524, 4
      %v526 = vadd.f32 %v524, %v525
      %v527 = vrot.slane %v526, 2
      %v528 = vadd.f32 %v526, %v527
      %v529 = vrot.slane %v528, 1
      %v530 = vadd.f32 %v528, %v529
      %v531 = vmul.f32 %v530, 0.0078125
      %v532 = vsub.f32 %v415, %v531
      %v533 = vsub.f32 %v420, %v531
      %v534 = vsub.f32 %v425, %v531
      %v535 = vsub.f32 %v430, %v531
      %v536 = vsub.f32 %v435, %v531
      %v537 = vsub.f32 %v440, %v531
      %v538 = vsub.f32 %v445, %v531
      %v539 = vsub.f32 %v450, %v531
      %v540 = vsub.f32 %v455, %v531
      %v541 = vsub.f32 %v460, %v531
      %v542 = vsub.f32 %v465, %v531
      %v543 = vsub.f32 %v470, %v531
      %v544 = vsub.f32 %v475, %v531
      %v545 = vsub.f32 %v480, %v531
      %v546 = vsub.f32 %v485, %v531
      %v547 = vsub.f32 %v490, %v531
      %v548 = vmul.f32 %v532, %v532
      %v549 = vmul.f32 %v533, %v533
      %v550 = vmul.f32 %v534, %v534
      %v551 = vmul.f32 %v535, %v535
      %v552 = vmul.f32 %v536, %v536
      %v553 = vmul.f32 %v537, %v537
      %v554 = vmul.f32 %v538, %v538
      %v555 = vmul.f32 %v539, %v539
      %v556 = vmul.f32 %v540, %v540
      %v557 = vmul.f32 %v541, %v541
      %v558 = vmul.f32 %v542, %v542
      %v559 = vmul.f32 %v543, %v543
      %v560 = vmul.f32 %v544, %v544
      %v561 = vmul.f32 %v545, %v545
      %v562 = vmul.f32 %v546, %v546
      %v563 = vmul.f32 %v547, %v547
      %v564 = vsel %vm493, %v548, 0.0
      %v565 = vsel %vm493, %v549, 0.0
      %v566 = vadd.f32 %v564, %v565
      %v567 = vsel %vm493, %v550, 0.0
      %v568 = vadd.f32 %v566, %v567
      %v569 = vsel %vm493, %v551, 0.0
      %v570 = vadd.f32 %v568, %v569
      %v571 = vsel %vm493, %v552, 0.0
      %v572 = vadd.f32 %v570, %v571
      %v573 = vsel %vm493, %v553, 0.0
      %v574 = vadd.f32 %v572, %v573
      %v575 = vsel %vm493, %v554, 0.0
      %v576 = vadd.f32 %v574, %v575
      %v577 = vsel %vm493, %v555, 0.0
      %v578 = vadd.f32 %v576, %v577
      %v579 = vsel %vm493, %v556, 0.0
      %v580 = vadd.f32 %v578, %v579
      %v581 = vsel %vm493, %v557, 0.0
      %v582 = vadd.f32 %v580, %v581
      %v583 = vsel %vm493, %v558, 0.0
      %v584 = vadd.f32 %v582, %v583
      %v585 = vsel %vm493, %v559, 0.0
      %v586 = vadd.f32 %v584, %v585
      %v587 = vsel %vm493, %v560, 0.0
      %v588 = vadd.f32 %v586, %v587
      %v589 = vsel %vm493, %v561, 0.0
      %v590 = vadd.f32 %v588, %v589
      %v591 = vsel %vm493, %v562, 0.0
      %v592 = vadd.f32 %v590, %v591
      %v593 = vsel %vm493, %v563, 0.0
      %v594 = vadd.f32 %v592, %v593
      %v595 = vrot.slane %v594, 4
      %v596 = vadd.f32 %v594, %v595
      %v597 = vrot.slane %v596, 2
      %v598 = vadd.f32 %v596, %v597
      %v599 = vrot.slane %v598, 1
      %v600 = vadd.f32 %v598, %v599
      %v601 = vmul.f32 %v600, 0.0078125
      %v602 = vadd.f32 %v601, 1e-05
      %v603 = vrsqrt.pop %v602
      %v604 = vld [vmem:[%s3] sm:$0x1]
      %v605 = vmul.f32 %v603, %v604
      %v606 = vlaneseq
      %v607 = vshrl.u32 %v606, 7
      %v608 = vsub.s32 0, %v607
      %v609 = vrot.slane %v605, %v608
      %v610 = vmul.f32 %v532, %v609
      %v611 = vmul.f32 %v533, %v609
      %v612 = vmul.f32 %v534, %v609
      %v613 = vmul.f32 %v535, %v609
      %v614 = vmul.f32 %v536, %v609
      %v615 = vmul.f32 %v537, %v609
      %v616 = vmul.f32 %v538, %v609
      %v617 = vmul.f32 %v539, %v609
      %v618 = vmul.f32 %v540, %v609
      %v619 = vmul.f32 %v541, %v609
      %v620 = vmul.f32 %v542, %v609
      %v621 = vmul.f32 %v543, %v609
      %v622 = vmul.f32 %v544, %v609
      %v623 = vmul.f32 %v545, %v609
      %v624 = vmul.f32 %v546, %v609
      %v625 = vmul.f32 %v547, %v609
      %v626 = vld [vmem:[%s4] sm:$0x1]
      %v628 = vlaneseq
      %v629 = vshrl.u32 %v628, 7
      %v630 = vsub.s32 0, %v629
      %v631 = vrot.slane %v626, %v630
      %v633 = vadd.f32 %v610, %v631
      %v634 = vadd.f32 %v611, %v631
      %v635 = vadd.f32 %v612, %v631
      %v636 = vadd.f32 %v613, %v631
      %v637 = vadd.f32 %v614, %v631
      %v638 = vadd.f32 %v615, %v631
      %v639 = vadd.f32 %v616, %v631
      %v640 = vadd.f32 %v617, %v631
      %v641 = vadd.f32 %v618, %v631
      %v642 = vadd.f32 %v619, %v631
      %v643 = vadd.f32 %v620, %v631
      %v644 = vadd.f32 %v621, %v631
      %v645 = vadd.f32 %v622, %v631
      %v646 = vadd.f32 %v623, %v631
      %v647 = vadd.f32 %v624, %v631
      %v648 = vadd.f32 %v625, %v631
      %v649 = vmax.f32 %v633, 0.0
      %v650 = vmax.f32 %v634, 0.0
      %v651 = vmax.f32 %v635, 0.0
      %v652 = vmax.f32 %v636, 0.0
      %v653 = vmax.f32 %v637, 0.0
      %v654 = vmax.f32 %v638, 0.0
      %v655 = vmax.f32 %v639, 0.0
      %v656 = vmax.f32 %v640, 0.0
      %v657 = vmax.f32 %v641, 0.0
      %v658 = vmax.f32 %v642, 0.0
      %v659 = vmax.f32 %v643, 0.0
      %v660 = vmax.f32 %v644, 0.0
      %v661 = vmax.f32 %v645, 0.0
      %v662 = vmax.f32 %v646, 0.0
      %v663 = vmax.f32 %v647, 0.0
      %v664 = vmax.f32 %v648, 0.0
      %665 = vst.msk [vmem:[#allocation2] sm:$0xff] %vm493, %v649
      %666 = vst.msk [vmem:[#allocation2 + $0x8] sm:$0xff] %vm493, %v650
      %669 = vrot.lane.b32.xlu0 %v651, 16
      %v670 = vpop.permute.xlu0 %669
      %671 = vrot.lane.b32.xlu0 %v652, 16
      %v672 = vpop.permute.xlu0 %671
      %vm675 = vcmask 261248
      %676 = vst.msk [vmem:[#allocation2] sm:$0xff] %vm675, %v670
      %677 = vst.msk [vmem:[#allocation2 + $0x8] sm:$0xff] %vm675, %v672
      %680 = vrot.lane.b32.xlu0 %v653, 32
      %v681 = vpop.permute.xlu0 %680
      %682 = vrot.lane.b32.xlu0 %v654, 32
      %v683 = vpop.permute.xlu0 %682
      %vm686 = vcmask 392448
      %687 = vst.msk [vmem:[#allocation2] sm:$0xff] %vm686, %v681
      %688 = vst.msk [vmem:[#allocation2 + $0x8] sm:$0xff] %vm686, %v683
      %691 = vrot.lane.b32.xlu0 %v655, 48
      %v692 = vpop.permute.xlu0 %691
      %693 = vrot.lane.b32.xlu0 %v656, 48
      %v694 = vpop.permute.xlu0 %693
      %vm697 = vcmask 523648
      %698 = vst.msk [vmem:[#allocation2] sm:$0xff] %vm697, %v692
      %699 = vst.msk [vmem:[#allocation2 + $0x8] sm:$0xff] %vm697, %v694
      %702 = vrot.lane.b32.xlu0 %v657, 64
      %v703 = vpop.permute.xlu0 %702
      %704 = vrot.lane.b32.xlu0 %v658, 64
      %v705 = vpop.permute.xlu0 %704
      %vm708 = vcmask 654848
      %709 = vst.msk [vmem:[#allocation2] sm:$0xff] %vm708, %v703
      %710 = vst.msk [vmem:[#allocation2 + $0x8] sm:$0xff] %vm708, %v705
      %713 = vrot.lane.b32.xlu0 %v659, 80
      %v714 = vpop.permute.xlu0 %713
      %715 = vrot.lane.b32.xlu0 %v660, 80
      %v716 = vpop.permute.xlu0 %715
      %vm719 = vcmask 786048
      %720 = vst.msk [vmem:[#allocation2] sm:$0xff] %vm719, %v714
      %721 = vst.msk [vmem:[#allocation2 + $0x8] sm:$0xff] %vm719, %v716
      %724 = vrot.lane.b32.xlu0 %v661, 96
      %v725 = vpop.permute.xlu0 %724
      %726 = vrot.lane.b32.xlu0 %v662, 96
      %v727 = vpop.permute.xlu0 %726
      %vm730 = vcmask 917248
      %731 = vst.msk [vmem:[#allocation2] sm:$0xff] %vm730, %v725
      %732 = vst.msk [vmem:[#allocation2 + $0x8] sm:$0xff] %vm730, %v727
      %735 = vrot.lane.b32.xlu0 %v663, 112
      %v736 = vpop.permute.xlu0 %735
      %737 = vrot.lane.b32.xlu0 %v664, 112
      %v738 = vpop.permute.xlu0 %737
      %vm741 = vcmask 1048448
      %742 = vst.msk [vmem:[#allocation2] sm:$0xff] %vm741, %v736
      %743 = vst.msk [vmem:[#allocation2 + $0x8] sm:$0xff] %vm741, %v738
      %v744 = vld [vmem:[#allocation2] sm:$0xff]
      %v745 = vld [vmem:[#allocation2 + $0x8] sm:$0xff]
      %v746 = vld [vmem:[%s5] sm:$0xff]
      %v747 = vld [vmem:[%s5 + $0x8] sm:$0xff]
      %v748 = vld [vmem:[%s5 + $0x10] sm:$0xff]
      %v749 = vld [vmem:[%s5 + $0x18] sm:$0xff]
      %v750 = vld [vmem:[%s5 + $0x20] sm:$0xff]
      %v751 = vld [vmem:[%s5 + $0x28] sm:$0xff]
      %v752 = vld [vmem:[%s5 + $0x30] sm:$0xff]
      %v753 = vld [vmem:[%s5 + $0x38] sm:$0xff]
      %v754 = vld [vmem:[%s5 + $0x40] sm:$0xff]
      %v755 = vld [vmem:[%s5 + $0x48] sm:$0xff]
      %v756 = vld [vmem:[%s5 + $0x50] sm:$0xff]
      %v757 = vld [vmem:[%s5 + $0x58] sm:$0xff]
      %v758 = vld [vmem:[%s5 + $0x60] sm:$0xff]
      %v759 = vld [vmem:[%s5 + $0x68] sm:$0xff]
      %v760 = vld [vmem:[%s5 + $0x70] sm:$0xff]
      %v761 = vld [vmem:[%s5 + $0x78] sm:$0xff]
      %v762 = vld [vmem:[%s6] sm:$0x1]
      %v764 = vlaneseq
      %v765 = vshrl.u32 %v764, 7
      %v766 = vsub.s32 0, %v765
      %v767 = vrot.slane %v762, %v766
      %769 = vmatprep.subr.mxu0 0.0
      %770 = vmatpush1.msra.mxu0 %v761
      %771 = vmatprep.subr.mxu0 0.0
      %772 = vmatpush1.msra.mxu0 %v760
      %773 = vmatprep.subr.mxu0 0.0
      %774 = vmatpush1.msra.mxu0 %v759
      %775 = vmatprep.subr.mxu0 0.0
      %776 = vmatpush1.msra.mxu0 %v758
      %777 = vmatprep.subr.mxu0 0.0
      %778 = vmatpush1.msra.mxu0 %v757
      %779 = vmatprep.subr.mxu0 0.0
      %780 = vmatpush1.msra.mxu0 %v756
      %781 = vmatprep.subr.mxu0 0.0
      %782 = vmatpush1.msra.mxu0 %v755
      %783 = vmatprep.subr.mxu0 0.0
      %784 = vmatpush1.msra.mxu0 %v754
      %785 = vmatprep.subr.mxu0 0.0
      %786 = vmatpush1.msra.mxu0 %v753
      %787 = vmatprep.subr.mxu0 0.0
      %788 = vmatpush1.msra.mxu0 %v752
      %789 = vmatprep.subr.mxu0 0.0
      %790 = vmatpush1.msra.mxu0 %v751
      %791 = vmatprep.subr.mxu0 0.0
      %792 = vmatpush1.msra.mxu0 %v750
      %793 = vmatprep.subr.mxu0 0.0
      %794 = vmatpush1.msra.mxu0 %v749
      %795 = vmatprep.subr.mxu0 0.0
      %796 = vmatpush1.msra.mxu0 %v748
      %797 = vmatprep.subr.mxu0 0.0
      %798 = vmatpush1.msra.mxu0 %v747
      %799 = vmatprep.subr.mxu0 0.0
      %800 = vmatpush1.msra.mxu0 %v746
      %801 = vmatprep.subr.mxu0 0.0
      %802 = vmatpush2.msra.mxu0 0.0
      %803 = vmatprep.subr.mxu0 0.0
      %804 = vmatpush2.msra.mxu0 0.0
      %805 = vmatprep.subr.mxu0 0.0
      %806 = vmatpush2.msra.mxu0 0.0
      %807 = vmatprep.subr.mxu0 0.0
      %808 = vmatpush2.msra.mxu0 0.0
      %809 = vmatprep.subr.mxu0 0.0
      %810 = vmatpush2.msra.mxu0 0.0
      %811 = vmatprep.subr.mxu0 0.0
      %812 = vmatpush2.msra.mxu0 0.0
      %813 = vmatprep.subr.mxu0 0.0
      %814 = vmatpush2.msra.mxu0 0.0
      %815 = vmatprep.subr.mxu0 0.0
      %816 = vmatpush2.msra.mxu0 0.0
      %817 = vmatprep.subr.mxu0 0.0
      %818 = vmatpush2.msra.mxu0 0.0
      %819 = vmatprep.subr.mxu0 0.0
      %820 = vmatpush2.msra.mxu0 0.0
      %821 = vmatprep.subr.mxu0 0.0
      %822 = vmatpush2.msra.mxu0 0.0
      %823 = vmatprep.subr.mxu0 0.0
      %824 = vmatpush2.msra.mxu0 0.0
      %825 = vmatprep.subr.mxu0 0.0
      %826 = vmatpush2.msra.mxu0 0.0
      %827 = vmatprep.subr.mxu0 0.0
      %828 = vmatpush2.msra.mxu0 0.0
      %829 = vmatprep.subr.mxu0 0.0
      %830 = vmatpush2.msra.mxu0 0.0
      %831 = vmatprep.subr.mxu0 0.0
      %832 = vmatpush2.msra.mxu0 0.0
      %833 = vmatprep.mubr.f32.mxu0 0.0
      %834 = vmatmul.mubr.f32.gmra.mxu0 %v744
      %v835 = vpop.f32.mrf.mxu0
      %v836 = vadd.f32 %v767, %v835
      %v837 = vpop.f32.mrf.mxu0
      %838 = vmatprep.mubr.f32.mxu0 0.0
      %839 = vmatmul.mubr.f32.gmra.mxu0 %v745
      %v840 = vpop.f32.mrf.mxu0
      %v841 = vadd.f32 %v767, %v840
      %v842 = vpop.f32.mrf.mxu0
      %843 = vdwg.mxu0
      %844 = vst [vmem:[%s280] sm:$0xff] %v836
      %845 = vst [vmem:[%s280 + $0x8] sm:$0xff] %v841
      %s846 = smul.u32 2, %s18
      %p847 = scmp.lt.s32.totalorder %s846, 3
      %s848 = scalar_select %p847, %s846, 3
      %s849 = smul.addr %s848, 8
      %s850 = scalar_lea.vmem %s7, %s849
      // Predicated region
      $region49: #{_lambda_.1} parent=47 // pred_check
        %p851 = pneg %p188
      $region50: #{_lambda_.1} parent=47 // pred_check_branch
        %853 = sbr.rel (%p851) target = $region52
      $region51: #{_lambda_.1} parent=47 // pred_region
        %s854 = smul.u32 2, %s18
      $region52: #{_lambda_.1} parent=47 // pred_fallthru
        _
    $region48: #{_lambda_.1} parent=5 // pred_fallthru
      _
    %p855 = scmp.le.s32.totalorder 2, %s13
    // Predicated region
    $region53: #{_lambda_.1} parent=5 // pred_check
      %p856 = pneg %p855
    $region54: #{_lambda_.1} parent=5 // pred_check_branch
      %858 = sbr.rel (%p856) target = $region56
    $region55: #{_lambda_.1} parent=5 // pred_region
      %s859 = ssub.s32 %s13, 2
      // Predicated region
      $region57: #{_lambda_.1} parent=55 // pred_check
        %p860 = pneg %p194
      $region58: #{_lambda_.1} parent=55 // pred_check_branch
        %862 = sbr.rel (%p860) target = $region60
      $region59: #{_lambda_.1} parent=55 // pred_region
        %s863 = smul.u32 2, %s19
        %p864 = scmp.lt.s32.totalorder %s863, 3
        %s865 = scalar_select %p864, %s863, 3
        %s866 = smul.addr %s865, 8
        %s867 = scalar_lea.vmem %s7, %s866
      $region60: #{_lambda_.1} parent=55 // pred_fallthru
        _
    $region56: #{_lambda_.1} parent=5 // pred_fallthru
      _
  $region6: #{_lambda_.1} parent=0 // loop_footer
    %s17 = sadd.s32 1, %s13
  $region7: #{_lambda_.1} parent=0 // loop_footer_branch
    %12 = sbr.rel target = $region3
  $region8: #{_lambda_.1} parent=0 // loop_exit
    _

</llo_original>
